<compile_context>
chip_gen: v7x
topology: tpu7x:2x2x1
jax: 0.10.0
libtpu: 0.0.40
codegen_flags: <defaults>
</compile_context>

<pallas_src>
import math

import jax
import jax.numpy as jnp
from jax.experimental import pallas as pl
from jax.experimental.pallas import tpu as pltpu


_NUM_FEATURES = 3
_C_EMBED = 16
# PyTorch nn.Linear weights are (out_features, in_features).
_MLP_DIMS = [(16, _C_EMBED), (32, 16), (64, 32), (32, 64), (16, 32), (1, 16)]


def _critic_kernel(x_ref,
                   w_emb_ref,
                   w1_ref, b1_ref,
                   w2_ref, b2_ref,
                   w3_ref, b3_ref,
                   w4_ref, b4_ref,
                   w5_ref, b5_ref,
                   w6_ref, b6_ref,
                   o_ref):
    """One tile of rows. Activations are (features, tile_m): M in lanes."""
    x = x_ref[...]                                            # (tm, F)

    # Embedding (Linear, no bias): h[e, m] = sum_k W_emb[e, k] * x[m, k].
    # Contracts dim 1 of both operands -> PyTorch (out, in) weight is used
    # directly, no transpose materialized anywhere.
    h = jax.lax.dot_general(
        w_emb_ref[...], x,
        dimension_numbers=(((1,), (1,)), ((), ())),
        preferred_element_type=jnp.float32)                   # (16, tm)

    def dense_relu(w_ref, b_ref, h):
        z = jnp.dot(w_ref[...], h, preferred_element_type=jnp.float32)
        return jnp.maximum(z + b_ref[...], 0.0)               # bias (C,1) bcast

    h = dense_relu(w1_ref, b1_ref, h)                         # (16, tm)
    h = dense_relu(w2_ref, b2_ref, h)                         # (32, tm)
    h = dense_relu(w3_ref, b3_ref, h)                         # (64, tm)
    h = dense_relu(w4_ref, b4_ref, h)                         # (32, tm)
    h = dense_relu(w5_ref, b5_ref, h)                         # (16, tm)

    # Final Linear(16 -> 1), no ReLU: VPU multiply + sublane reduce.
    # w6_ref is passed as (16, 1); result is lane-dense (1, tm).
    y = jnp.sum(h * w6_ref[...], axis=0, keepdims=True) + b6_ref[...]
    o_ref[...] = y.astype(o_ref.dtype)


def critic_forward(items: jax.Array, params: dict, *, block_m: int | None = None):
    """items: (..., num_features) -> (...,) reward per row (matches Critic)."""
    lead = items.shape[:-1]
    f = items.shape[-1]
    m = 1
    for d in lead:
        m *= d
    x2d = items.reshape(m, f)

    if block_m is None:
        # Lane-dense tile: multiple of 128, capped so per-tile VMEM stays small
        # on every generation (v7x's 64 MiB included).
        block_m = max(128, min(512, ((m + 127) // 128) * 128))
    grid_m = pl.cdiv(m, block_m)
    m_pad = grid_m * block_m
    if m_pad != m:
        x2d = jnp.pad(x2d, ((0, m_pad - m), (0, 0)))

    w_emb = params["w_emb"]                                   # (16, F)
    ws = [params[f"w{i}"] for i in range(1, 7)]               # PyTorch (out, in)
    bs = [params[f"b{i}"].reshape(-1, 1) for i in range(1, 7)]  # (C, 1)
    w6_col = ws[5].reshape(-1, 1)                             # (16, 1)

    weight_args = [w_emb,
                   ws[0], bs[0], ws[1], bs[1], ws[2], bs[2],
                   ws[3], bs[3], ws[4], bs[4], w6_col, bs[5]]

    def _const(i):  # weights/biases are resident across the whole grid
        return (0, 0)

    weight_specs = [pl.BlockSpec(tuple(a.shape), _const) for a in weight_args]

    flops_per_row = 2 * (_C_EMBED * f + sum(o * i for o, i in _MLP_DIMS))
    n_param = sum(int(a.size) for a in weight_args)
    cost = pl.CostEstimate(
        flops=flops_per_row * m_pad,
        transcendentals=0,
        bytes_accessed=4 * (m_pad * f + m_pad + n_param),
    )

    out = pl.pallas_call(
        _critic_kernel,
        out_shape=jax.ShapeDtypeStruct((1, m_pad), items.dtype),
        grid=(grid_m,),
        in_specs=[pl.BlockSpec((block_m, f), lambda i: (i, 0))] + weight_specs,
        out_specs=pl.BlockSpec((1, block_m), lambda i: (0, i)),
        compiler_params=pltpu.CompilerParams(
            dimension_semantics=("parallel",)),
        cost_estimate=cost,
    )(x2d, *weight_args)

    return out[0, :m].reshape(lead)


def init_critic_params(key, num_features=_NUM_FEATURES, c_embed=_C_EMBED):
    """Deterministic init mimicking nn.Linear: U(-1/sqrt(fan_in), 1/sqrt(fan_in))."""
    params = {}
    key, k = jax.random.split(key)
    bound = 1.0 / math.sqrt(num_features)
    params["w_emb"] = jax.random.uniform(
        k, (c_embed, num_features), jnp.float32, -bound, bound)
    for idx, (out_f, in_f) in enumerate(_MLP_DIMS, start=1):
        key, kw, kb = jax.random.split(key, 3)
        bound = 1.0 / math.sqrt(in_f)
        params[f"w{idx}"] = jax.random.uniform(
            kw, (out_f, in_f), jnp.float32, -bound, bound)
        params[f"b{idx}"] = jax.random.uniform(
            kb, (out_f,), jnp.float32, -bound, bound)
    return params


def critic_reference(items, params):
    """Plain-JAX reference matching the PyTorch Critic forward."""
    hp = jax.lax.Precision.HIGHEST
    h = jnp.einsum("...k,ek->...e", items, params["w_emb"], precision=hp)
    for i in range(1, 6):
        h = jnp.einsum("...i,oi->...o", h, params[f"w{i}"], precision=hp)
        h = jnp.maximum(h + params[f"b{i}"], 0.0)
    y = jnp.einsum("...i,oi->...o", h, params["w6"], precision=hp) + params["b6"]
    return y[..., 0]


if __name__ == "__main__":
    key = jax.random.PRNGKey(0)
    k_items, k_params = jax.random.split(key)

    batch, seq = 2, 8
    items = jax.random.normal(
        k_items, (batch, seq, _NUM_FEATURES), dtype=jnp.float32)
    params = init_critic_params(k_params)

    out = critic_forward(items, params)
    out = jax.block_until_ready(out)

    ref = critic_reference(items, params)
    assert out.shape == (batch, seq), out.shape
    max_err = float(jnp.max(jnp.abs(out - ref)))
    assert jnp.allclose(out, ref, atol=1e-3, rtol=1e-3), f"max_err={max_err}"

    print("KERNEL_OK")
</pallas_src>

<mosaic_0001>
module attributes {stable_mosaic.version = 11 : i64} {
  func.func @_critic_kernel(%arg0: i32, %arg1: memref<128x3xf32, #tpu.memory_space<vmem>>, %arg2: memref<16x3xf32, #tpu.memory_space<vmem>>, %arg3: memref<16x16xf32, #tpu.memory_space<vmem>>, %arg4: memref<16x1xf32, #tpu.memory_space<vmem>>, %arg5: memref<32x16xf32, #tpu.memory_space<vmem>>, %arg6: memref<32x1xf32, #tpu.memory_space<vmem>>, %arg7: memref<64x32xf32, #tpu.memory_space<vmem>>, %arg8: memref<64x1xf32, #tpu.memory_space<vmem>>, %arg9: memref<32x64xf32, #tpu.memory_space<vmem>>, %arg10: memref<32x1xf32, #tpu.memory_space<vmem>>, %arg11: memref<16x32xf32, #tpu.memory_space<vmem>>, %arg12: memref<16x1xf32, #tpu.memory_space<vmem>>, %arg13: memref<16x1xf32, #tpu.memory_space<vmem>>, %arg14: memref<1x1xf32, #tpu.memory_space<vmem>>, %arg15: memref<1x128xf32, #tpu.memory_space<vmem>>) attributes {dimension_semantics = [#tpu.dimension_semantics<parallel>], iteration_bounds = array<i64: 1>, scalar_prefetch = 0 : i64, scratch_operands = 0 : i64, tpu.core_type = #tpu.core_type<tc>, window_params = [{transform_indices = @transform_0, window_bounds = array<i64: 128, 3>}, {pipeline_mode = #tpu.pipeline_mode<synchronous>, transform_indices = @transform_1, window_bounds = array<i64: 16, 3>}, {pipeline_mode = #tpu.pipeline_mode<synchronous>, transform_indices = @transform_2, window_bounds = array<i64: 16, 16>}, {pipeline_mode = #tpu.pipeline_mode<synchronous>, transform_indices = @transform_3, window_bounds = array<i64: 16, 1>}, {pipeline_mode = #tpu.pipeline_mode<synchronous>, transform_indices = @transform_4, window_bounds = array<i64: 32, 16>}, {pipeline_mode = #tpu.pipeline_mode<synchronous>, transform_indices = @transform_5, window_bounds = array<i64: 32, 1>}, {pipeline_mode = #tpu.pipeline_mode<synchronous>, transform_indices = @transform_6, window_bounds = array<i64: 64, 32>}, {pipeline_mode = #tpu.pipeline_mode<synchronous>, transform_indices = @transform_7, window_bounds = array<i64: 64, 1>}, {pipeline_mode = #tpu.pipeline_mode<synchronous>, transform_indices = @transform_8, window_bounds = array<i64: 32, 64>}, {pipeline_mode = #tpu.pipeline_mode<synchronous>, transform_indices = @transform_9, window_bounds = array<i64: 32, 1>}, {pipeline_mode = #tpu.pipeline_mode<synchronous>, transform_indices = @transform_10, window_bounds = array<i64: 16, 32>}, {pipeline_mode = #tpu.pipeline_mode<synchronous>, transform_indices = @transform_11, window_bounds = array<i64: 16, 1>}, {pipeline_mode = #tpu.pipeline_mode<synchronous>, transform_indices = @transform_12, window_bounds = array<i64: 16, 1>}, {pipeline_mode = #tpu.pipeline_mode<synchronous>, transform_indices = @transform_13, window_bounds = array<i64: 1, 1>}, {transform_indices = @transform_14, window_bounds = array<i64: 1, 128>}]} {
    %c0 = arith.constant 0 : index
    %c0_0 = arith.constant 0 : index
    %0 = vector.load %arg1[%c0, %c0_0] : memref<128x3xf32, #tpu.memory_space<vmem>>, vector<128x3xf32>
    %c0_1 = arith.constant 0 : index
    %c0_2 = arith.constant 0 : index
    %1 = vector.load %arg2[%c0_1, %c0_2] : memref<16x3xf32, #tpu.memory_space<vmem>>, vector<16x3xf32>
    %cst = arith.constant dense<0.000000e+00> : vector<16x128xf32>
    %2 = tpu.matmul %1, %0, %cst {dimension_numbers = #tpu.dot_dimension_numbers<[1], [1], [0], [0], [0, 0, 1, 0], [], []>} : vector<16x3xf32>, vector<128x3xf32>, vector<16x128xf32> -> vector<16x128xf32>
    %c0_3 = arith.constant 0 : index
    %c0_4 = arith.constant 0 : index
    %3 = vector.load %arg3[%c0_3, %c0_4] : memref<16x16xf32, #tpu.memory_space<vmem>>, vector<16x16xf32>
    %cst_5 = arith.constant dense<0.000000e+00> : vector<16x128xf32>
    %4 = tpu.matmul %3, %2, %cst_5 {dimension_numbers = #tpu.dot_dimension_numbers<[1], [0], [0], [1], [0, 0, 1, 1], [], []>} : vector<16x16xf32>, vector<16x128xf32>, vector<16x128xf32> -> vector<16x128xf32>
    %c0_6 = arith.constant 0 : index
    %c0_7 = arith.constant 0 : index
    %5 = vector.load %arg4[%c0_6, %c0_7] : memref<16x1xf32, #tpu.memory_space<vmem>>, vector<16x1xf32>
    %6 = vector.broadcast %5 : vector<16x1xf32> to vector<16x128xf32>
    %7 = arith.addf %4, %6 : vector<16x128xf32>
    %cst_8 = arith.constant 0.000000e+00 : f32
    %8 = vector.broadcast %cst_8 : f32 to vector<16x128xf32>
    %9 = arith.maximumf %7, %8 : vector<16x128xf32>
    %c0_9 = arith.constant 0 : index
    %c0_10 = arith.constant 0 : index
    %10 = vector.load %arg5[%c0_9, %c0_10] : memref<32x16xf32, #tpu.memory_space<vmem>>, vector<32x16xf32>
    %cst_11 = arith.constant dense<0.000000e+00> : vector<32x128xf32>
    %11 = tpu.matmul %10, %9, %cst_11 {dimension_numbers = #tpu.dot_dimension_numbers<[1], [0], [0], [1], [0, 0, 1, 1], [], []>} : vector<32x16xf32>, vector<16x128xf32>, vector<32x128xf32> -> vector<32x128xf32>
    %c0_12 = arith.constant 0 : index
    %c0_13 = arith.constant 0 : index
    %12 = vector.load %arg6[%c0_12, %c0_13] : memref<32x1xf32, #tpu.memory_space<vmem>>, vector<32x1xf32>
    %13 = vector.broadcast %12 : vector<32x1xf32> to vector<32x128xf32>
    %14 = arith.addf %11, %13 : vector<32x128xf32>
    %cst_14 = arith.constant 0.000000e+00 : f32
    %15 = vector.broadcast %cst_14 : f32 to vector<32x128xf32>
    %16 = arith.maximumf %14, %15 : vector<32x128xf32>
    %c0_15 = arith.constant 0 : index
    %c0_16 = arith.constant 0 : index
    %17 = vector.load %arg7[%c0_15, %c0_16] : memref<64x32xf32, #tpu.memory_space<vmem>>, vector<64x32xf32>
    %cst_17 = arith.constant dense<0.000000e+00> : vector<64x128xf32>
    %18 = tpu.matmul %17, %16, %cst_17 {dimension_numbers = #tpu.dot_dimension_numbers<[1], [0], [0], [1], [0, 0, 1, 1], [], []>} : vector<64x32xf32>, vector<32x128xf32>, vector<64x128xf32> -> vector<64x128xf32>
    %c0_18 = arith.constant 0 : index
    %c0_19 = arith.constant 0 : index
    %19 = vector.load %arg8[%c0_18, %c0_19] : memref<64x1xf32, #tpu.memory_space<vmem>>, vector<64x1xf32>
    %20 = vector.broadcast %19 : vector<64x1xf32> to vector<64x128xf32>
    %21 = arith.addf %18, %20 : vector<64x128xf32>
    %cst_20 = arith.constant 0.000000e+00 : f32
    %22 = vector.broadcast %cst_20 : f32 to vector<64x128xf32>
    %23 = arith.maximumf %21, %22 : vector<64x128xf32>
    %c0_21 = arith.constant 0 : index
    %c0_22 = arith.constant 0 : index
    %24 = vector.load %arg9[%c0_21, %c0_22] : memref<32x64xf32, #tpu.memory_space<vmem>>, vector<32x64xf32>
    %cst_23 = arith.constant dense<0.000000e+00> : vector<32x128xf32>
    %25 = tpu.matmul %24, %23, %cst_23 {dimension_numbers = #tpu.dot_dimension_numbers<[1], [0], [0], [1], [0, 0, 1, 1], [], []>} : vector<32x64xf32>, vector<64x128xf32>, vector<32x128xf32> -> vector<32x128xf32>
    %c0_24 = arith.constant 0 : index
    %c0_25 = arith.constant 0 : index
    %26 = vector.load %arg10[%c0_24, %c0_25] : memref<32x1xf32, #tpu.memory_space<vmem>>, vector<32x1xf32>
    %27 = vector.broadcast %26 : vector<32x1xf32> to vector<32x128xf32>
    %28 = arith.addf %25, %27 : vector<32x128xf32>
    %cst_26 = arith.constant 0.000000e+00 : f32
    %29 = vector.broadcast %cst_26 : f32 to vector<32x128xf32>
    %30 = arith.maximumf %28, %29 : vector<32x128xf32>
    %c0_27 = arith.constant 0 : index
    %c0_28 = arith.constant 0 : index
    %31 = vector.load %arg11[%c0_27, %c0_28] : memref<16x32xf32, #tpu.memory_space<vmem>>, vector<16x32xf32>
    %cst_29 = arith.constant dense<0.000000e+00> : vector<16x128xf32>
    %32 = tpu.matmul %31, %30, %cst_29 {dimension_numbers = #tpu.dot_dimension_numbers<[1], [0], [0], [1], [0, 0, 1, 1], [], []>} : vector<16x32xf32>, vector<32x128xf32>, vector<16x128xf32> -> vector<16x128xf32>
    %c0_30 = arith.constant 0 : index
    %c0_31 = arith.constant 0 : index
    %33 = vector.load %arg12[%c0_30, %c0_31] : memref<16x1xf32, #tpu.memory_space<vmem>>, vector<16x1xf32>
    %34 = vector.broadcast %33 : vector<16x1xf32> to vector<16x128xf32>
    %35 = arith.addf %32, %34 : vector<16x128xf32>
    %cst_32 = arith.constant 0.000000e+00 : f32
    %36 = vector.broadcast %cst_32 : f32 to vector<16x128xf32>
    %37 = arith.maximumf %35, %36 : vector<16x128xf32>
    %c0_33 = arith.constant 0 : index
    %c0_34 = arith.constant 0 : index
    %38 = vector.load %arg13[%c0_33, %c0_34] : memref<16x1xf32, #tpu.memory_space<vmem>>, vector<16x1xf32>
    %39 = vector.broadcast %38 : vector<16x1xf32> to vector<16x128xf32>
    %40 = arith.mulf %37, %39 : vector<16x128xf32>
    %cst_35 = arith.constant dense<0.000000e+00> : vector<128xf32>
    %41 = vector.multi_reduction <add>, %40, %cst_35 [0] : vector<16x128xf32> to vector<128xf32>
    %42 = vector.shape_cast %41 : vector<128xf32> to vector<1x128xf32>
    %c0_36 = arith.constant 0 : index
    %c0_37 = arith.constant 0 : index
    %43 = vector.load %arg14[%c0_36, %c0_37] : memref<1x1xf32, #tpu.memory_space<vmem>>, vector<1x1xf32>
    %44 = vector.broadcast %43 : vector<1x1xf32> to vector<1x128xf32>
    %45 = arith.addf %42, %44 : vector<1x128xf32>
    %c0_38 = arith.constant 0 : index
    %c0_39 = arith.constant 0 : index
    %46 = vector.load %arg15[%c0_38, %c0_39] : memref<1x128xf32, #tpu.memory_space<vmem>>, vector<1x128xf32>
    tpu.vector_store %arg15[%c0_38, %c0_39], %45 {strides = array<i32>} : memref<1x128xf32, #tpu.memory_space<vmem>>, vector<1x128xf32>,
    return
  }
  func.func @transform_0(%arg0: i32) -> (i32, i32) {
    %c0_i32 = arith.constant 0 : i32
    %c0_i32_0 = arith.constant 0 : i32
    return %arg0, %c0_i32 : i32, i32
  }
  func.func @transform_1(%arg0: i32) -> (i32, i32) {
    %c0_i32 = arith.constant 0 : i32
    %c0_i32_0 = arith.constant 0 : i32
    %c0_i32_1 = arith.constant 0 : i32
    return %c0_i32, %c0_i32_0 : i32, i32
  }
  func.func @transform_2(%arg0: i32) -> (i32, i32) {
    %c0_i32 = arith.constant 0 : i32
    %c0_i32_0 = arith.constant 0 : i32
    %c0_i32_1 = arith.constant 0 : i32
    return %c0_i32, %c0_i32_0 : i32, i32
  }
  func.func @transform_3(%arg0: i32) -> (i32, i32) {
    %c0_i32 = arith.constant 0 : i32
    %c0_i32_0 = arith.constant 0 : i32
    %c0_i32_1 = arith.constant 0 : i32
    return %c0_i32, %c0_i32_0 : i32, i32
  }
  func.func @transform_4(%arg0: i32) -> (i32, i32) {
    %c0_i32 = arith.constant 0 : i32
    %c0_i32_0 = arith.constant 0 : i32
    %c0_i32_1 = arith.constant 0 : i32
    return %c0_i32, %c0_i32_0 : i32, i32
  }
  func.func @transform_5(%arg0: i32) -> (i32, i32) {
    %c0_i32 = arith.constant 0 : i32
    %c0_i32_0 = arith.constant 0 : i32
    %c0_i32_1 = arith.constant 0 : i32
    return %c0_i32, %c0_i32_0 : i32, i32
  }
  func.func @transform_6(%arg0: i32) -> (i32, i32) {
    %c0_i32 = arith.constant 0 : i32
    %c0_i32_0 = arith.constant 0 : i32
    %c0_i32_1 = arith.constant 0 : i32
    return %c0_i32, %c0_i32_0 : i32, i32
  }
  func.func @transform_7(%arg0: i32) -> (i32, i32) {
    %c0_i32 = arith.constant 0 : i32
    %c0_i32_0 = arith.constant 0 : i32
    %c0_i32_1 = arith.constant 0 : i32
    return %c0_i32, %c0_i32_0 : i32, i32
  }
  func.func @transform_8(%arg0: i32) -> (i32, i32) {
    %c0_i32 = arith.constant 0 : i32
    %c0_i32_0 = arith.constant 0 : i32
    %c0_i32_1 = arith.constant 0 : i32
    return %c0_i32, %c0_i32_0 : i32, i32
  }
  func.func @transform_9(%arg0: i32) -> (i32, i32) {
    %c0_i32 = arith.constant 0 : i32
    %c0_i32_0 = arith.constant 0 : i32
    %c0_i32_1 = arith.constant 0 : i32
    return %c0_i32, %c0_i32_0 : i32, i32
  }
  func.func @transform_10(%arg0: i32) -> (i32, i32) {
    %c0_i32 = arith.constant 0 : i32
    %c0_i32_0 = arith.constant 0 : i32
    %c0_i32_1 = arith.constant 0 : i32
    return %c0_i32, %c0_i32_0 : i32, i32
  }
  func.func @transform_11(%arg0: i32) -> (i32, i32) {
    %c0_i32 = arith.constant 0 : i32
    %c0_i32_0 = arith.constant 0 : i32
    %c0_i32_1 = arith.constant 0 : i32
    return %c0_i32, %c0_i32_0 : i32, i32
  }
  func.func @transform_12(%arg0: i32) -> (i32, i32) {
    %c0_i32 = arith.constant 0 : i32
    %c0_i32_0 = arith.constant 0 : i32
    %c0_i32_1 = arith.constant 0 : i32
    return %c0_i32, %c0_i32_0 : i32, i32
  }
  func.func @transform_13(%arg0: i32) -> (i32, i32) {
    %c0_i32 = arith.constant 0 : i32
    %c0_i32_0 = arith.constant 0 : i32
    %c0_i32_1 = arith.constant 0 : i32
    return %c0_i32, %c0_i32_0 : i32, i32
  }
  func.func @transform_14(%arg0: i32) -> (i32, i32) {
    %c0_i32 = arith.constant 0 : i32
    %c0_i32_0 = arith.constant 0 : i32
    return %c0_i32, %arg0 : i32, i32
  }
}

</mosaic_0001>

<llo_original>
// kernel: tpu_custom_call.1
$region0: #{tpu_custom_call.1}
  #allocation0 [shape = 'u32[]', space=smem, size = 0x4, offset = 0x4, fixed_abs, tag = 'smem constant byte address 0x4 - core index']
  #allocation1 [shape = 'u32[144,128]{1,0:T(1,128)}', space=vmem, size = 0x12000, scoped, tag = 'internal scratch']
  #allocation2 [shape = 'f32[1,1]{1,0:T(1,128)S(1)}', space=vmem, size = 0x200, scoped, tag = 'scoped memory for tpu_custom_call.1']
  %s0 = inlined_call_operand.vmem [shape: f32[128,3], index: 0, kind: input, shape index: {}]
  %s1 = inlined_call_operand.vmem [shape: f32[16,3], index: 1, kind: input, shape index: {}]
  %s2 = inlined_call_operand.vmem [shape: f32[16,16], index: 2, kind: input, shape index: {}]
  %s3 = inlined_call_operand.vmem [shape: f32[16,1], index: 3, kind: input, shape index: {}]
  %s4 = inlined_call_operand.vmem [shape: f32[32,16], index: 4, kind: input, shape index: {}]
  %s5 = inlined_call_operand.vmem [shape: f32[32,1], index: 5, kind: input, shape index: {}]
  %s6 = inlined_call_operand.vmem [shape: f32[64,32], index: 6, kind: input, shape index: {}]
  %s7 = inlined_call_operand.vmem [shape: f32[64,1], index: 7, kind: input, shape index: {}]
  %s8 = inlined_call_operand.vmem [shape: f32[32,64], index: 8, kind: input, shape index: {}]
  %s9 = inlined_call_operand.vmem [shape: f32[32,1], index: 9, kind: input, shape index: {}]
  %s10 = inlined_call_operand.vmem [shape: f32[16,32], index: 10, kind: input, shape index: {}]
  %s11 = inlined_call_operand.vmem [shape: f32[16,1], index: 11, kind: input, shape index: {}]
  %s12 = inlined_call_operand.vmem [shape: f32[16,1], index: 12, kind: input, shape index: {}]
  %s13 = inlined_call_operand.<no memory space> [shape: f32[1,1], index: 13, kind: input, shape index: {}]
  %s14 = inlined_call_operand.hbm [shape: f32[1,128], index: 14, kind: output, shape index: {}]
  %s15 = sld [smem:[#allocation0]]
  $region66: #{tpu_custom_call.1} parent=0
    _
  %s17 = ssub.s32 1, %s15
  %s18 = scalar_select 0, %s17, %s15
  %v19 = vstv %s13
  %20 = vst [vmem:[#allocation2] sm:$0x1] %v19
  $region1: #{tpu_custom_call.1} parent=0
    #allocation3 [shape = 'u8[512]{0}', space=vmem, size = 0x400, scoped, tag = 'output window, operand 0, single buffered']
    #allocation4 [shape = 's32[1]{0}', space=sflag, size = 0x4, scoped, tag = 'scoped memory for tpu_custom_call.1']
    %21 = vsyncpa [#allocation4], 0
    // Predicated region
    $region2: #{tpu_custom_call.1} parent=1 // pred_check
      _
    $region3: #{tpu_custom_call.1} parent=1 // pred_check_branch
      %23 = sbr.rel (0) target = $region5
    $region4: #{tpu_custom_call.1} parent=1 // pred_region
      _
    $region5: #{tpu_custom_call.1} parent=1 // pred_fallthru
      _
    // Predicated region
    $region6: #{tpu_custom_call.1} parent=1 // pred_check
      _
    $region7: #{tpu_custom_call.1} parent=1 // pred_check_branch
      %25 = sbr.rel (0) target = $region9
    $region8: #{tpu_custom_call.1} parent=1 // pred_region
      _
    $region9: #{tpu_custom_call.1} parent=1 // pred_fallthru
      _
    // Predicated region
    $region10: #{tpu_custom_call.1} parent=1 // pred_check
      _
    $region11: #{tpu_custom_call.1} parent=1 // pred_check_branch
      %27 = sbr.rel (0) target = $region13
    $region12: #{tpu_custom_call.1} parent=1 // pred_region
      _
    $region13: #{tpu_custom_call.1} parent=1 // pred_fallthru
      _
    // Predicated region
    $region14: #{tpu_custom_call.1} parent=1 // pred_check
      _
    $region15: #{tpu_custom_call.1} parent=1 // pred_check_branch
      %29 = sbr.rel (0) target = $region17
    $region16: #{tpu_custom_call.1} parent=1 // pred_region
      _
    $region17: #{tpu_custom_call.1} parent=1 // pred_fallthru
      _
    // Predicated region
    $region18: #{tpu_custom_call.1} parent=1 // pred_check
      _
    $region19: #{tpu_custom_call.1} parent=1 // pred_check_branch
      %31 = sbr.rel (0) target = $region21
    $region20: #{tpu_custom_call.1} parent=1 // pred_region
      _
    $region21: #{tpu_custom_call.1} parent=1 // pred_fallthru
      _
    // Predicated region
    $region22: #{tpu_custom_call.1} parent=1 // pred_check
      _
    $region23: #{tpu_custom_call.1} parent=1 // pred_check_branch
      %33 = sbr.rel (0) target = $region25
    $region24: #{tpu_custom_call.1} parent=1 // pred_region
      _
    $region25: #{tpu_custom_call.1} parent=1 // pred_fallthru
      _
    // Predicated region
    $region26: #{tpu_custom_call.1} parent=1 // pred_check
      _
    $region27: #{tpu_custom_call.1} parent=1 // pred_check_branch
      %35 = sbr.rel (0) target = $region29
    $region28: #{tpu_custom_call.1} parent=1 // pred_region
      _
    $region29: #{tpu_custom_call.1} parent=1 // pred_fallthru
      _
    // Predicated region
    $region30: #{tpu_custom_call.1} parent=1 // pred_check
      _
    $region31: #{tpu_custom_call.1} parent=1 // pred_check_branch
      %37 = sbr.rel (0) target = $region33
    $region32: #{tpu_custom_call.1} parent=1 // pred_region
      _
    $region33: #{tpu_custom_call.1} parent=1 // pred_fallthru
      _
    // Predicated region
    $region34: #{tpu_custom_call.1} parent=1 // pred_check
      _
    $region35: #{tpu_custom_call.1} parent=1 // pred_check_branch
      %39 = sbr.rel (0) target = $region37
    $region36: #{tpu_custom_call.1} parent=1 // pred_region
      _
    $region37: #{tpu_custom_call.1} parent=1 // pred_fallthru
      _
    // Predicated region
    $region38: #{tpu_custom_call.1} parent=1 // pred_check
      _
    $region39: #{tpu_custom_call.1} parent=1 // pred_check_branch
      %41 = sbr.rel (0) target = $region41
    $region40: #{tpu_custom_call.1} parent=1 // pred_region
      _
    $region41: #{tpu_custom_call.1} parent=1 // pred_fallthru
      _
    // Predicated region
    $region42: #{tpu_custom_call.1} parent=1 // pred_check
      _
    $region43: #{tpu_custom_call.1} parent=1 // pred_check_branch
      %43 = sbr.rel (0) target = $region45
    $region44: #{tpu_custom_call.1} parent=1 // pred_region
      _
    $region45: #{tpu_custom_call.1} parent=1 // pred_fallthru
      _
    // Predicated region
    $region46: #{tpu_custom_call.1} parent=1 // pred_check
      _
    $region47: #{tpu_custom_call.1} parent=1 // pred_check_branch
      %45 = sbr.rel (0) target = $region49
    $region48: #{tpu_custom_call.1} parent=1 // pred_region
      _
    $region49: #{tpu_custom_call.1} parent=1 // pred_fallthru
      _
    // Predicated region
    $region50: #{tpu_custom_call.1} parent=1 // pred_check
      _
    $region51: #{tpu_custom_call.1} parent=1 // pred_check_branch
      %47 = sbr.rel (0) target = $region53
    $region52: #{tpu_custom_call.1} parent=1 // pred_region
      _
    $region53: #{tpu_custom_call.1} parent=1 // pred_fallthru
      _
    // Predicated region
    $region54: #{tpu_custom_call.1} parent=1 // pred_check
      _
    $region55: #{tpu_custom_call.1} parent=1 // pred_check_branch
      %49 = sbr.rel (0) target = $region57
    $region56: #{tpu_custom_call.1} parent=1 // pred_region
      _
    $region57: #{tpu_custom_call.1} parent=1 // pred_fallthru
      _
    %v50 = vld [vmem:[%s0] sm:$0xff]
    %v51 = vld [vmem:[%s0 + $0x8] sm:$0xff]
    %v52 = vld [vmem:[%s0 + $0x10] sm:$0xff]
    %v53 = vld [vmem:[%s0 + $0x18] sm:$0xff]
    %v54 = vld [vmem:[%s0 + $0x20] sm:$0xff]
    %v55 = vld [vmem:[%s0 + $0x28] sm:$0xff]
    %v56 = vld [vmem:[%s0 + $0x30] sm:$0xff]
    %v57 = vld [vmem:[%s0 + $0x38] sm:$0xff]
    %v58 = vld [vmem:[%s0 + $0x40] sm:$0xff]
    %v59 = vld [vmem:[%s0 + $0x48] sm:$0xff]
    %v60 = vld [vmem:[%s0 + $0x50] sm:$0xff]
    %v61 = vld [vmem:[%s0 + $0x58] sm:$0xff]
    %v62 = vld [vmem:[%s0 + $0x60] sm:$0xff]
    %v63 = vld [vmem:[%s0 + $0x68] sm:$0xff]
    %v64 = vld [vmem:[%s0 + $0x70] sm:$0xff]
    %v65 = vld [vmem:[%s0 + $0x78] sm:$0xff]
    %v66 = vld [vmem:[%s1] sm:$0xff]
    %v67 = vld [vmem:[%s1 + $0x8] sm:$0xff]
    %vm68 = vcmask 23552
    %v70 = vsel %vm68, %v66, 0
    %v73 = vsel %vm68, %v67, 0
    %v76 = vsel %vm68, %v50, 0
    %v79 = vsel %vm68, %v51, 0
    %v82 = vsel %vm68, %v52, 0
    %v85 = vsel %vm68, %v53, 0
    %v88 = vsel %vm68, %v54, 0
    %v91 = vsel %vm68, %v55, 0
    %v94 = vsel %vm68, %v56, 0
    %v97 = vsel %vm68, %v57, 0
    %v100 = vsel %vm68, %v58, 0
    %v103 = vsel %vm68, %v59, 0
    %v106 = vsel %vm68, %v60, 0
    %v109 = vsel %vm68, %v61, 0
    %v112 = vsel %vm68, %v62, 0
    %v115 = vsel %vm68, %v63, 0
    %v118 = vsel %vm68, %v64, 0
    %v121 = vsel %vm68, %v65, 0
    %123 = vmatprep.subr.mxu0 0.0
    %124 = vmatpush1.xpose.msra.mxu0 %v76
    %125 = vmatprep.subr.mxu0 0.0
    %126 = vmatpush1.xpose.msra.mxu0 %v79
    %127 = vmatprep.subr.mxu0 0.0
    %128 = vmatpush1.xpose.msra.mxu0 %v82
    %129 = vmatprep.subr.mxu0 0.0
    %130 = vmatpush1.xpose.msra.mxu0 %v85
    %131 = vmatprep.subr.mxu0 0.0
    %132 = vmatpush1.xpose.msra.mxu0 %v88
    %133 = vmatprep.subr.mxu0 0.0
    %134 = vmatpush1.xpose.msra.mxu0 %v91
    %135 = vmatprep.subr.mxu0 0.0
    %136 = vmatpush1.xpose.msra.mxu0 %v94
    %137 = vmatprep.subr.mxu0 0.0
    %138 = vmatpush1.xpose.msra.mxu0 %v97
    %139 = vmatprep.subr.mxu0 0.0
    %140 = vmatpush1.xpose.msra.mxu0 %v100
    %141 = vmatprep.subr.mxu0 0.0
    %142 = vmatpush1.xpose.msra.mxu0 %v103
    %143 = vmatprep.subr.mxu0 0.0
    %144 = vmatpush1.xpose.msra.mxu0 %v106
    %145 = vmatprep.subr.mxu0 0.0
    %146 = vmatpush1.xpose.msra.mxu0 %v109
    %147 = vmatprep.subr.mxu0 0.0
    %148 = vmatpush1.xpose.msra.mxu0 %v112
    %149 = vmatprep.subr.mxu0 0.0
    %150 = vmatpush1.xpose.msra.mxu0 %v115
    %151 = vmatprep.subr.mxu0 0.0
    %152 = vmatpush1.xpose.msra.mxu0 %v118
    %153 = vmatprep.subr.mxu0 0.0
    %154 = vmatpush1.xpose.msra.mxu0 %v121
    %155 = vmatprep.subr.mxu0 0.0
    %156 = vmatpush1.xpose.msra.mxu0 0.0
    %157 = vmatprep.subr.mxu0 0.0
    %158 = vmatpush1.xpose.msra.mxu0 0.0
    %159 = vmatprep.subr.mxu0 0.0
    %160 = vmatpush1.xpose.msra.mxu0 0.0
    %161 = vmatprep.subr.mxu0 0.0
    %162 = vmatpush1.xpose.msra.mxu0 0.0
    %163 = vmatprep.subr.mxu0 0.0
    %164 = vmatpush1.xpose.msra.mxu0 0.0
    %165 = vmatprep.subr.mxu0 0.0
    %166 = vmatpush1.xpose.msra.mxu0 0.0
    %167 = vmatprep.subr.mxu0 0.0
    %168 = vmatpush1.xpose.msra.mxu0 0.0
    %169 = vmatprep.subr.mxu0 0.0
    %170 = vmatpush1.xpose.msra.mxu0 0.0
    %171 = vmatprep.subr.mxu0 0.0
    %172 = vmatpush1.xpose.msra.mxu0 0.0
    %173 = vmatprep.subr.mxu0 0.0
    %174 = vmatpush1.xpose.msra.mxu0 0.0
    %175 = vmatprep.subr.mxu0 0.0
    %176 = vmatpush1.xpose.msra.mxu0 0.0
    %177 = vmatprep.subr.mxu0 0.0
    %178 = vmatpush1.xpose.msra.mxu0 0.0
    %179 = vmatprep.subr.mxu0 0.0
    %180 = vmatpush1.xpose.msra.mxu0 0.0
    %181 = vmatprep.subr.mxu0 0.0
    %182 = vmatpush1.xpose.msra.mxu0 0.0
    %183 = vmatprep.subr.mxu0 0.0
    %184 = vmatpush1.xpose.msra.mxu0 0.0
    %185 = vmatprep.subr.mxu0 0.0
    %186 = vmatpush1.xpose.msra.mxu0 0.0
    %187 = vmatprep.mubr.f32.mxu0 0.0
    %188 = vmatmul.mubr.f32.gmra.mrb[0].mxu0 %v70
    %v189 = vpop.f32.mrb[0].mxu0
    %v190 = vadd.f32 0.0, %v189
    %v191 = vpop.f32.mrb[0].mxu0
    %192 = vmatprep.mubr.f32.mxu0 0.0
    %193 = vmatmul.mubr.f32.gmra.mrb[0].mxu0 %v73
    %v194 = vpop.f32.mrb[0].mxu0
    %v195 = vadd.f32 0.0, %v194
    %v196 = vpop.f32.mrb[0].mxu0
    %197 = vdwg.mxu0
    %v198 = vld [vmem:[%s2] sm:$0xff]
    %v199 = vld [vmem:[%s2 + $0x8] sm:$0xff]
    %v200 = vld [vmem:[%s3] sm:$0xff]
    %v201 = vld [vmem:[%s3 + $0x8] sm:$0xff]
    %203 = vset.pattern.permute.xlu0 0
    %204 = vperm.xlu0 %203, %v200
    %v205 = vpop.permute.xlu0 %204
    %208 = vset.pattern.permute.xlu0 0
    %209 = vperm.xlu0 %208, %v201
    %v210 = vpop.permute.xlu0 %209
    %vm212 = vcmask 130048
    %v214 = vsel %vm212, %v198, 0
    %v217 = vsel %vm212, %v199, 0
    %219 = vmatprep.subr.mxu0 0.0
    %220 = vmatpush1.msra.mxu0 %v190
    %221 = vmatprep.subr.mxu0 0.0
    %222 = vmatpush1.msra.mxu0 %v195
    %223 = vmatprep.subr.mxu0 0.0
    %224 = vmatpush1.msra.mxu0 0.0
    %225 = vmatprep.subr.mxu0 0.0
    %226 = vmatpush1.msra.mxu0 0.0
    %227 = vmatprep.subr.mxu0 0.0
    %228 = vmatpush1.msra.mxu0 0.0
    %229 = vmatprep.subr.mxu0 0.0
    %230 = vmatpush1.msra.mxu0 0.0
    %231 = vmatprep.subr.mxu0 0.0
    %232 = vmatpush1.msra.mxu0 0.0
    %233 = vmatprep.subr.mxu0 0.0
    %234 = vmatpush1.msra.mxu0 0.0
    %235 = vmatprep.subr.mxu0 0.0
    %236 = vmatpush1.msra.mxu0 0.0
    %237 = vmatprep.subr.mxu0 0.0
    %238 = vmatpush1.msra.mxu0 0.0
    %239 = vmatprep.subr.mxu0 0.0
    %240 = vmatpush1.msra.mxu0 0.0
    %241 = vmatprep.subr.mxu0 0.0
    %242 = vmatpush1.msra.mxu0 0.0
    %243 = vmatprep.subr.mxu0 0.0
    %244 = vmatpush1.msra.mxu0 0.0
    %245 = vmatprep.subr.mxu0 0.0
    %246 = vmatpush1.msra.mxu0 0.0
    %247 = vmatprep.subr.mxu0 0.0
    %248 = vmatpush1.msra.mxu0 0.0
    %249 = vmatprep.subr.mxu0 0.0
    %250 = vmatpush1.msra.mxu0 0.0
    %251 = vmatprep.subr.mxu0 0.0
    %252 = vmatpush1.msra.mxu0 0.0
    %253 = vmatprep.subr.mxu0 0.0
    %254 = vmatpush1.msra.mxu0 0.0
    %255 = vmatprep.subr.mxu0 0.0
    %256 = vmatpush1.msra.mxu0 0.0
    %257 = vmatprep.subr.mxu0 0.0
    %258 = vmatpush1.msra.mxu0 0.0
    %259 = vmatprep.subr.mxu0 0.0
    %260 = vmatpush1.msra.mxu0 0.0
    %261 = vmatprep.subr.mxu0 0.0
    %262 = vmatpush1.msra.mxu0 0.0
    %263 = vmatprep.subr.mxu0 0.0
    %264 = vmatpush1.msra.mxu0 0.0
    %265 = vmatprep.subr.mxu0 0.0
    %266 = vmatpush1.msra.mxu0 0.0
    %267 = vmatprep.subr.mxu0 0.0
    %268 = vmatpush1.msra.mxu0 0.0
    %269 = vmatprep.subr.mxu0 0.0
    %270 = vmatpush1.msra.mxu0 0.0
    %271 = vmatprep.subr.mxu0 0.0
    %272 = vmatpush1.msra.mxu0 0.0
    %273 = vmatprep.subr.mxu0 0.0
    %274 = vmatpush1.msra.mxu0 0.0
    %275 = vmatprep.subr.mxu0 0.0
    %276 = vmatpush1.msra.mxu0 0.0
    %277 = vmatprep.subr.mxu0 0.0
    %278 = vmatpush1.msra.mxu0 0.0
    %279 = vmatprep.subr.mxu0 0.0
    %280 = vmatpush1.msra.mxu0 0.0
    %281 = vmatprep.subr.mxu0 0.0
    %282 = vmatpush1.msra.mxu0 0.0
    %283 = vmatprep.mubr.f32.mxu0 0.0
    %284 = vmatmul.mubr.f32.gmra.mrb[0].mxu0 %v214
    %v285 = vpop.f32.mrb[0].mxu0
    %v286 = vadd.f32 %v205, %v285
    %v287 = vpop.f32.mrb[0].mxu0
    %288 = vmatprep.mubr.f32.mxu0 0.0
    %289 = vmatmul.mubr.f32.gmra.mrb[0].mxu0 %v217
    %v290 = vpop.f32.mrb[0].mxu0
    %v291 = vadd.f32 %v210, %v290
    %v292 = vpop.f32.mrb[0].mxu0
    %293 = vdwg.mxu0
    %v294 = vmax.f32 %v286, 0.0
    %v295 = vmax.f32 %v291, 0.0
    %v296 = vld [vmem:[%s4] sm:$0xff]
    %v297 = vld [vmem:[%s4 + $0x8] sm:$0xff]
    %v298 = vld [vmem:[%s4 + $0x10] sm:$0xff]
    %v299 = vld [vmem:[%s4 + $0x18] sm:$0xff]
    %v300 = vld [vmem:[%s5] sm:$0xff]
    %v301 = vld [vmem:[%s5 + $0x8] sm:$0xff]
    %v302 = vld [vmem:[%s5 + $0x10] sm:$0xff]
    %v303 = vld [vmem:[%s5 + $0x18] sm:$0xff]
    %305 = vset.pattern.permute.xlu0 0
    %306 = vperm.xlu0 %305, %v300
    %v307 = vpop.permute.xlu0 %306
    %310 = vset.pattern.permute.xlu0 0
    %311 = vperm.xlu0 %310, %v301
    %v312 = vpop.permute.xlu0 %311
    %315 = vset.pattern.permute.xlu0 0
    %316 = vperm.xlu0 %315, %v302
    %v317 = vpop.permute.xlu0 %316
    %320 = vset.pattern.permute.xlu0 0
    %321 = vperm.xlu0 %320, %v303
    %v322 = vpop.permute.xlu0 %321
    %v325 = vsel %vm212, %v296, 0
    %v328 = vsel %vm212, %v297, 0
    %v331 = vsel %vm212, %v298, 0
    %v334 = vsel %vm212, %v299, 0
    %336 = vmatprep.subr.mxu0 0.0
    %337 = vmatpush1.msra.mxu0 %v294
    %338 = vmatprep.subr.mxu0 0.0
    %339 = vmatpush1.msra.mxu0 %v295
    %340 = vmatprep.subr.mxu0 0.0
    %341 = vmatpush1.msra.mxu0 0.0
    %342 = vmatprep.subr.mxu0 0.0
    %343 = vmatpush1.msra.mxu0 0.0
    %344 = vmatprep.subr.mxu0 0.0
    %345 = vmatpush1.msra.mxu0 0.0
    %346 = vmatprep.subr.mxu0 0.0
    %347 = vmatpush1.msra.mxu0 0.0
    %348 = vmatprep.subr.mxu0 0.0
    %349 = vmatpush1.msra.mxu0 0.0
    %350 = vmatprep.subr.mxu0 0.0
    %351 = vmatpush1.msra.mxu0 0.0
    %352 = vmatprep.subr.mxu0 0.0
    %353 = vmatpush1.msra.mxu0 0.0
    %354 = vmatprep.subr.mxu0 0.0
    %355 = vmatpush1.msra.mxu0 0.0
    %356 = vmatprep.subr.mxu0 0.0
    %357 = vmatpush1.msra.mxu0 0.0
    %358 = vmatprep.subr.mxu0 0.0
    %359 = vmatpush1.msra.mxu0 0.0
    %360 = vmatprep.subr.mxu0 0.0
    %361 = vmatpush1.msra.mxu0 0.0
    %362 = vmatprep.subr.mxu0 0.0
    %363 = vmatpush1.msra.mxu0 0.0
    %364 = vmatprep.subr.mxu0 0.0
    %365 = vmatpush1.msra.mxu0 0.0
    %366 = vmatprep.subr.mxu0 0.0
    %367 = vmatpush1.msra.mxu0 0.0
    %368 = vmatprep.subr.mxu0 0.0
    %369 = vmatpush1.msra.mxu0 0.0
    %370 = vmatprep.subr.mxu0 0.0
    %371 = vmatpush1.msra.mxu0 0.0
    %372 = vmatprep.subr.mxu0 0.0
    %373 = vmatpush1.msra.mxu0 0.0
    %374 = vmatprep.subr.mxu0 0.0
    %375 = vmatpush1.msra.mxu0 0.0
    %376 = vmatprep.subr.mxu0 0.0
    %377 = vmatpush1.msra.mxu0 0.0
    %378 = vmatprep.subr.mxu0 0.0
    %379 = vmatpush1.msra.mxu0 0.0
    %380 = vmatprep.subr.mxu0 0.0
    %381 = vmatpush1.msra.mxu0 0.0
    %382 = vmatprep.subr.mxu0 0.0
    %383 = vmatpush1.msra.mxu0 0.0
    %384 = vmatprep.subr.mxu0 0.0
    %385 = vmatpush1.msra.mxu0 0.0
    %386 = vmatprep.subr.mxu0 0.0
    %387 = vmatpush1.msra.mxu0 0.0
    %388 = vmatprep.subr.mxu0 0.0
    %389 = vmatpush1.msra.mxu0 0.0
    %390 = vmatprep.subr.mxu0 0.0
    %391 = vmatpush1.msra.mxu0 0.0
    %392 = vmatprep.subr.mxu0 0.0
    %393 = vmatpush1.msra.mxu0 0.0
    %394 = vmatprep.subr.mxu0 0.0
    %395 = vmatpush1.msra.mxu0 0.0
    %396 = vmatprep.subr.mxu0 0.0
    %397 = vmatpush1.msra.mxu0 0.0
    %398 = vmatprep.subr.mxu0 0.0
    %399 = vmatpush1.msra.mxu0 0.0
    %400 = vmatprep.mubr.f32.mxu0 0.0
    %401 = vmatmul.mubr.f32.gmra.mrb[0].mxu0 %v325
    %v402 = vpop.f32.mrb[0].mxu0
    %v403 = vadd.f32 %v307, %v402
    %v404 = vpop.f32.mrb[0].mxu0
    %405 = vmatprep.mubr.f32.mxu0 0.0
    %406 = vmatmul.mubr.f32.gmra.mrb[0].mxu0 %v328
    %v407 = vpop.f32.mrb[0].mxu0
    %v408 = vadd.f32 %v312, %v407
    %v409 = vpop.f32.mrb[0].mxu0
    %410 = vmatprep.mubr.f32.mxu0 0.0
    %411 = vmatmul.mubr.f32.gmra.mrb[0].mxu0 %v331
    %v412 = vpop.f32.mrb[0].mxu0
    %v413 = vadd.f32 %v317, %v412
    %v414 = vpop.f32.mrb[0].mxu0
    %415 = vmatprep.mubr.f32.mxu0 0.0
    %416 = vmatmul.mubr.f32.gmra.mrb[0].mxu0 %v334
    %v417 = vpop.f32.mrb[0].mxu0
    %v418 = vadd.f32 %v322, %v417
    %v419 = vpop.f32.mrb[0].mxu0
    %420 = vdwg.mxu0
    %v421 = vmax.f32 %v403, 0.0
    %v422 = vmax.f32 %v408, 0.0
    %v423 = vmax.f32 %v413, 0.0
    %v424 = vmax.f32 %v418, 0.0
    %v425 = vld [vmem:[%s6] sm:$0xff]
    %v426 = vld [vmem:[%s6 + $0x8] sm:$0xff]
    %v427 = vld [vmem:[%s6 + $0x10] sm:$0xff]
    %v428 = vld [vmem:[%s6 + $0x18] sm:$0xff]
    %v429 = vld [vmem:[%s6 + $0x20] sm:$0xff]
    %v430 = vld [vmem:[%s6 + $0x28] sm:$0xff]
    %v431 = vld [vmem:[%s6 + $0x30] sm:$0xff]
    %v432 = vld [vmem:[%s6 + $0x38] sm:$0xff]
    %v433 = vld [vmem:[%s7] sm:$0xff]
    %v434 = vld [vmem:[%s7 + $0x8] sm:$0xff]
    %v435 = vld [vmem:[%s7 + $0x10] sm:$0xff]
    %v436 = vld [vmem:[%s7 + $0x18] sm:$0xff]
    %v437 = vld [vmem:[%s7 + $0x20] sm:$0xff]
    %v438 = vld [vmem:[%s7 + $0x28] sm:$0xff]
    %v439 = vld [vmem:[%s7 + $0x30] sm:$0xff]
    %v440 = vld [vmem:[%s7 + $0x38] sm:$0xff]
    %442 = vset.pattern.permute.xlu0 0
    %443 = vperm.xlu0 %442, %v433
    %v444 = vpop.permute.xlu0 %443
    %447 = vset.pattern.permute.xlu0 0
    %448 = vperm.xlu0 %447, %v434
    %v449 = vpop.permute.xlu0 %448
    %452 = vset.pattern.permute.xlu0 0
    %453 = vperm.xlu0 %452, %v435
    %v454 = vpop.permute.xlu0 %453
    %457 = vset.pattern.permute.xlu0 0
    %458 = vperm.xlu0 %457, %v436
    %v459 = vpop.permute.xlu0 %458
    %462 = vset.pattern.permute.xlu0 0
    %463 = vperm.xlu0 %462, %v437
    %v464 = vpop.permute.xlu0 %463
    %467 = vset.pattern.permute.xlu0 0
    %468 = vperm.xlu0 %467, %v438
    %v469 = vpop.permute.xlu0 %468
    %472 = vset.pattern.permute.xlu0 0
    %473 = vperm.xlu0 %472, %v439
    %v474 = vpop.permute.xlu0 %473
    %477 = vset.pattern.permute.xlu0 0
    %478 = vperm.xlu0 %477, %v440
    %v479 = vpop.permute.xlu0 %478
    %vm481 = vcmask 261120
    %v483 = vsel %vm481, %v425, 0
    %v486 = vsel %vm481, %v426, 0
    %v489 = vsel %vm481, %v427, 0
    %v492 = vsel %vm481, %v428, 0
    %v495 = vsel %vm481, %v429, 0
    %v498 = vsel %vm481, %v430, 0
    %v501 = vsel %vm481, %v431, 0
    %v504 = vsel %vm481, %v432, 0
    %506 = vmatprep.subr.mxu0 0.0
    %507 = vmatpush1.msra.mxu0 %v421
    %508 = vmatprep.subr.mxu0 0.0
    %509 = vmatpush1.msra.mxu0 %v422
    %510 = vmatprep.subr.mxu0 0.0
    %511 = vmatpush1.msra.mxu0 %v423
    %512 = vmatprep.subr.mxu0 0.0
    %513 = vmatpush1.msra.mxu0 %v424
    %514 = vmatprep.subr.mxu0 0.0
    %515 = vmatpush1.msra.mxu0 0.0
    %516 = vmatprep.subr.mxu0 0.0
    %517 = vmatpush1.msra.mxu0 0.0
    %518 = vmatprep.subr.mxu0 0.0
    %519 = vmatpush1.msra.mxu0 0.0
    %520 = vmatprep.subr.mxu0 0.0
    %521 = vmatpush1.msra.mxu0 0.0
    %522 = vmatprep.subr.mxu0 0.0
    %523 = vmatpush1.msra.mxu0 0.0
    %524 = vmatprep.subr.mxu0 0.0
    %525 = vmatpush1.msra.mxu0 0.0
    %526 = vmatprep.subr.mxu0 0.0
    %527 = vmatpush1.msra.mxu0 0.0
    %528 = vmatprep.subr.mxu0 0.0
    %529 = vmatpush1.msra.mxu0 0.0
    %530 = vmatprep.subr.mxu0 0.0
    %531 = vmatpush1.msra.mxu0 0.0
    %532 = vmatprep.subr.mxu0 0.0
    %533 = vmatpush1.msra.mxu0 0.0
    %534 = vmatprep.subr.mxu0 0.0
    %535 = vmatpush1.msra.mxu0 0.0
    %536 = vmatprep.subr.mxu0 0.0
    %537 = vmatpush1.msra.mxu0 0.0
    %538 = vmatprep.subr.mxu0 0.0
    %539 = vmatpush1.msra.mxu0 0.0
    %540 = vmatprep.subr.mxu0 0.0
    %541 = vmatpush1.msra.mxu0 0.0
    %542 = vmatprep.subr.mxu0 0.0
    %543 = vmatpush1.msra.mxu0 0.0
    %544 = vmatprep.subr.mxu0 0.0
    %545 = vmatpush1.msra.mxu0 0.0
    %546 = vmatprep.subr.mxu0 0.0
    %547 = vmatpush1.msra.mxu0 0.0
    %548 = vmatprep.subr.mxu0 0.0
    %549 = vmatpush1.msra.mxu0 0.0
    %550 = vmatprep.subr.mxu0 0.0
    %551 = vmatpush1.msra.mxu0 0.0
    %552 = vmatprep.subr.mxu0 0.0
    %553 = vmatpush1.msra.mxu0 0.0
    %554 = vmatprep.subr.mxu0 0.0
    %555 = vmatpush1.msra.mxu0 0.0
    %556 = vmatprep.subr.mxu0 0.0
    %557 = vmatpush1.msra.mxu0 0.0
    %558 = vmatprep.subr.mxu0 0.0
    %559 = vmatpush1.msra.mxu0 0.0
    %560 = vmatprep.subr.mxu0 0.0
    %561 = vmatpush1.msra.mxu0 0.0
    %562 = vmatprep.subr.mxu0 0.0
    %563 = vmatpush1.msra.mxu0 0.0
    %564 = vmatprep.subr.mxu0 0.0
    %565 = vmatpush1.msra.mxu0 0.0
    %566 = vmatprep.subr.mxu0 0.0
    %567 = vmatpush1.msra.mxu0 0.0
    %568 = vmatprep.subr.mxu0 0.0
    %569 = vmatpush1.msra.mxu0 0.0
    %570 = vmatprep.mubr.f32.mxu0 0.0
    %571 = vmatmul.mubr.f32.gmra.mrb[0].mxu0 %v483
    %v572 = vpop.f32.mrb[0].mxu0
    %v573 = vadd.f32 %v444, %v572
    %v574 = vpop.f32.mrb[0].mxu0
    %575 = vmatprep.mubr.f32.mxu0 0.0
    %576 = vmatmul.mubr.f32.gmra.mrb[0].mxu0 %v486
    %v577 = vpop.f32.mrb[0].mxu0
    %v578 = vadd.f32 %v449, %v577
    %v579 = vpop.f32.mrb[0].mxu0
    %580 = vmatprep.mubr.f32.mxu0 0.0
    %581 = vmatmul.mubr.f32.gmra.mrb[0].mxu0 %v489
    %v582 = vpop.f32.mrb[0].mxu0
    %v583 = vadd.f32 %v454, %v582
    %v584 = vpop.f32.mrb[0].mxu0
    %585 = vmatprep.mubr.f32.mxu0 0.0
    %586 = vmatmul.mubr.f32.gmra.mrb[0].mxu0 %v492
    %v587 = vpop.f32.mrb[0].mxu0
    %v588 = vadd.f32 %v459, %v587
    %v589 = vpop.f32.mrb[0].mxu0
    %590 = vmatprep.mubr.f32.mxu0 0.0
    %591 = vmatmul.mubr.f32.gmra.mrb[0].mxu0 %v495
    %v592 = vpop.f32.mrb[0].mxu0
    %v593 = vadd.f32 %v464, %v592
    %v594 = vpop.f32.mrb[0].mxu0
    %595 = vmatprep.mubr.f32.mxu0 0.0
    %596 = vmatmul.mubr.f32.gmra.mrb[0].mxu0 %v498
    %v597 = vpop.f32.mrb[0].mxu0
    %v598 = vadd.f32 %v469, %v597
    %v599 = vpop.f32.mrb[0].mxu0
    %600 = vmatprep.mubr.f32.mxu0 0.0
    %601 = vmatmul.mubr.f32.gmra.mrb[0].mxu0 %v501
    %v602 = vpop.f32.mrb[0].mxu0
    %v603 = vadd.f32 %v474, %v602
    %v604 = vpop.f32.mrb[0].mxu0
    %605 = vmatprep.mubr.f32.mxu0 0.0
    %606 = vmatmul.mubr.f32.gmra.mrb[0].mxu0 %v504
    %v607 = vpop.f32.mrb[0].mxu0
    %v608 = vadd.f32 %v479, %v607
    %v609 = vpop.f32.mrb[0].mxu0
    %610 = vdwg.mxu0
    %v611 = vmax.f32 %v573, 0.0
    %v612 = vmax.f32 %v578, 0.0
    %v613 = vmax.f32 %v583, 0.0
    %v614 = vmax.f32 %v588, 0.0
    %v615 = vmax.f32 %v593, 0.0
    %v616 = vmax.f32 %v598, 0.0
    %v617 = vmax.f32 %v603, 0.0
    %v618 = vmax.f32 %v608, 0.0
    %v619 = vld [vmem:[%s8] sm:$0xff]
    %v620 = vld [vmem:[%s8 + $0x8] sm:$0xff]
    %v621 = vld [vmem:[%s8 + $0x10] sm:$0xff]
    %v622 = vld [vmem:[%s8 + $0x18] sm:$0xff]
    %v623 = vld [vmem:[%s9] sm:$0xff]
    %v624 = vld [vmem:[%s9 + $0x8] sm:$0xff]
    %v625 = vld [vmem:[%s9 + $0x10] sm:$0xff]
    %v626 = vld [vmem:[%s9 + $0x18] sm:$0xff]
    %628 = vset.pattern.permute.xlu0 0
    %629 = vperm.xlu0 %628, %v623
    %v630 = vpop.permute.xlu0 %629
    %633 = vset.pattern.permute.xlu0 0
    %634 = vperm.xlu0 %633, %v624
    %v635 = vpop.permute.xlu0 %634
    %638 = vset.pattern.permute.xlu0 0
    %639 = vperm.xlu0 %638, %v625
    %v640 = vpop.permute.xlu0 %639
    %643 = vset.pattern.permute.xlu0 0
    %644 = vperm.xlu0 %643, %v626
    %v645 = vpop.permute.xlu0 %644
    %vm647 = vcmask 523264
    %v649 = vsel %vm647, %v619, 0
    %v652 = vsel %vm647, %v620, 0
    %v655 = vsel %vm647, %v621, 0
    %v658 = vsel %vm647, %v622, 0
    %660 = vmatprep.subr.mxu0 0.0
    %661 = vmatpush1.msra.mxu0 %v611
    %662 = vmatprep.subr.mxu0 0.0
    %663 = vmatpush1.msra.mxu0 %v612
    %664 = vmatprep.subr.mxu0 0.0
    %665 = vmatpush1.msra.mxu0 %v613
    %666 = vmatprep.subr.mxu0 0.0
    %667 = vmatpush1.msra.mxu0 %v614
    %668 = vmatprep.subr.mxu0 0.0
    %669 = vmatpush1.msra.mxu0 %v615
    %670 = vmatprep.subr.mxu0 0.0
    %671 = vmatpush1.msra.mxu0 %v616
    %672 = vmatprep.subr.mxu0 0.0
    %673 = vmatpush1.msra.mxu0 %v617
    %674 = vmatprep.subr.mxu0 0.0
    %675 = vmatpush1.msra.mxu0 %v618
    %676 = vmatprep.subr.mxu0 0.0
    %677 = vmatpush1.msra.mxu0 0.0
    %678 = vmatprep.subr.mxu0 0.0
    %679 = vmatpush1.msra.mxu0 0.0
    %680 = vmatprep.subr.mxu0 0.0
    %681 = vmatpush1.msra.mxu0 0.0
    %682 = vmatprep.subr.mxu0 0.0
    %683 = vmatpush1.msra.mxu0 0.0
    %684 = vmatprep.subr.mxu0 0.0
    %685 = vmatpush1.msra.mxu0 0.0
    %686 = vmatprep.subr.mxu0 0.0
    %687 = vmatpush1.msra.mxu0 0.0
    %688 = vmatprep.subr.mxu0 0.0
    %689 = vmatpush1.msra.mxu0 0.0
    %690 = vmatprep.subr.mxu0 0.0
    %691 = vmatpush1.msra.mxu0 0.0
    %692 = vmatprep.subr.mxu0 0.0
    %693 = vmatpush1.msra.mxu0 0.0
    %694 = vmatprep.subr.mxu0 0.0
    %695 = vmatpush1.msra.mxu0 0.0
    %696 = vmatprep.subr.mxu0 0.0
    %697 = vmatpush1.msra.mxu0 0.0
    %698 = vmatprep.subr.mxu0 0.0
    %699 = vmatpush1.msra.mxu0 0.0
    %700 = vmatprep.subr.mxu0 0.0
    %701 = vmatpush1.msra.mxu0 0.0
    %702 = vmatprep.subr.mxu0 0.0
    %703 = vmatpush1.msra.mxu0 0.0
    %704 = vmatprep.subr.mxu0 0.0
    %705 = vmatpush1.msra.mxu0 0.0
    %706 = vmatprep.subr.mxu0 0.0
    %707 = vmatpush1.msra.mxu0 0.0
    %708 = vmatprep.subr.mxu0 0.0
    %709 = vmatpush1.msra.mxu0 0.0
    %710 = vmatprep.subr.mxu0 0.0
    %711 = vmatpush1.msra.mxu0 0.0
    %712 = vmatprep.subr.mxu0 0.0
    %713 = vmatpush1.msra.mxu0 0.0
    %714 = vmatprep.subr.mxu0 0.0
    %715 = vmatpush1.msra.mxu0 0.0
    %716 = vmatprep.subr.mxu0 0.0
    %717 = vmatpush1.msra.mxu0 0.0
    %718 = vmatprep.subr.mxu0 0.0
    %719 = vmatpush1.msra.mxu0 0.0
    %720 = vmatprep.subr.mxu0 0.0
    %721 = vmatpush1.msra.mxu0 0.0
    %722 = vmatprep.subr.mxu0 0.0
    %723 = vmatpush1.msra.mxu0 0.0
    %724 = vmatprep.mubr.f32.mxu0 0.0
    %725 = vmatmul.mubr.f32.gmra.mrb[0].mxu0 %v649
    %v726 = vpop.f32.mrb[0].mxu0
    %v727 = vadd.f32 %v630, %v726
    %v728 = vpop.f32.mrb[0].mxu0
    %729 = vmatprep.mubr.f32.mxu0 0.0
    %730 = vmatmul.mubr.f32.gmra.mrb[0].mxu0 %v652
    %v731 = vpop.f32.mrb[0].mxu0
    %v732 = vadd.f32 %v635, %v731
    %v733 = vpop.f32.mrb[0].mxu0
    %734 = vmatprep.mubr.f32.mxu0 0.0
    %735 = vmatmul.mubr.f32.gmra.mrb[0].mxu0 %v655
    %v736 = vpop.f32.mrb[0].mxu0
    %v737 = vadd.f32 %v640, %v736
    %v738 = vpop.f32.mrb[0].mxu0
    %739 = vmatprep.mubr.f32.mxu0 0.0
    %740 = vmatmul.mubr.f32.gmra.mrb[0].mxu0 %v658
    %v741 = vpop.f32.mrb[0].mxu0
    %v742 = vadd.f32 %v645, %v741
    %v743 = vpop.f32.mrb[0].mxu0
    %744 = vdwg.mxu0
    %v745 = vmax.f32 %v727, 0.0
    %v746 = vmax.f32 %v732, 0.0
    %v747 = vmax.f32 %v737, 0.0
    %v748 = vmax.f32 %v742, 0.0
    %v749 = vld [vmem:[%s10] sm:$0xff]
    %v750 = vld [vmem:[%s10 + $0x8] sm:$0xff]
    %v751 = vld [vmem:[%s11] sm:$0xff]
    %v752 = vld [vmem:[%s11 + $0x8] sm:$0xff]
    %754 = vset.pattern.permute.xlu0 0
    %755 = vperm.xlu0 %754, %v751
    %v756 = vpop.permute.xlu0 %755
    %759 = vset.pattern.permute.xlu0 0
    %760 = vperm.xlu0 %759, %v752
    %v761 = vpop.permute.xlu0 %760
    %v764 = vsel %vm481, %v749, 0
    %v767 = vsel %vm481, %v750, 0
    %769 = vmatprep.subr.mxu0 0.0
    %770 = vmatpush1.msra.mxu0 %v745
    %771 = vmatprep.subr.mxu0 0.0
    %772 = vmatpush1.msra.mxu0 %v746
    %773 = vmatprep.subr.mxu0 0.0
    %774 = vmatpush1.msra.mxu0 %v747
    %775 = vmatprep.subr.mxu0 0.0
    %776 = vmatpush1.msra.mxu0 %v748
    %777 = vmatprep.subr.mxu0 0.0
    %778 = vmatpush1.msra.mxu0 0.0
    %779 = vmatprep.subr.mxu0 0.0
    %780 = vmatpush1.msra.mxu0 0.0
    %781 = vmatprep.subr.mxu0 0.0
    %782 = vmatpush1.msra.mxu0 0.0
    %783 = vmatprep.subr.mxu0 0.0
    %784 = vmatpush1.msra.mxu0 0.0
    %785 = vmatprep.subr.mxu0 0.0
    %786 = vmatpush1.msra.mxu0 0.0
    %787 = vmatprep.subr.mxu0 0.0
    %788 = vmatpush1.msra.mxu0 0.0
    %789 = vmatprep.subr.mxu0 0.0
    %790 = vmatpush1.msra.mxu0 0.0
    %791 = vmatprep.subr.mxu0 0.0
    %792 = vmatpush1.msra.mxu0 0.0
    %793 = vmatprep.subr.mxu0 0.0
    %794 = vmatpush1.msra.mxu0 0.0
    %795 = vmatprep.subr.mxu0 0.0
    %796 = vmatpush1.msra.mxu0 0.0
    %797 = vmatprep.subr.mxu0 0.0
    %798 = vmatpush1.msra.mxu0 0.0
    %799 = vmatprep.subr.mxu0 0.0
    %800 = vmatpush1.msra.mxu0 0.0
    %801 = vmatprep.subr.mxu0 0.0
    %802 = vmatpush1.msra.mxu0 0.0
    %803 = vmatprep.subr.mxu0 0.0
    %804 = vmatpush1.msra.mxu0 0.0
    %805 = vmatprep.subr.mxu0 0.0
    %806 = vmatpush1.msra.mxu0 0.0
    %807 = vmatprep.subr.mxu0 0.0
    %808 = vmatpush1.msra.mxu0 0.0
    %809 = vmatprep.subr.mxu0 0.0
    %810 = vmatpush1.msra.mxu0 0.0
    %811 = vmatprep.subr.mxu0 0.0
    %812 = vmatpush1.msra.mxu0 0.0
    %813 = vmatprep.subr.mxu0 0.0
    %814 = vmatpush1.msra.mxu0 0.0
    %815 = vmatprep.subr.mxu0 0.0
    %816 = vmatpush1.msra.mxu0 0.0
    %817 = vmatprep.subr.mxu0 0.0
    %818 = vmatpush1.msra.mxu0 0.0
    %819 = vmatprep.subr.mxu0 0.0
    %820 = vmatpush1.msra.mxu0 0.0
    %821 = vmatprep.subr.mxu0 0.0
    %822 = vmatpush1.msra.mxu0 0.0
    %823 = vmatprep.subr.mxu0 0.0
    %824 = vmatpush1.msra.mxu0 0.0
    %825 = vmatprep.subr.mxu0 0.0
    %826 = vmatpush1.msra.mxu0 0.0
    %827 = vmatprep.subr.mxu0 0.0
    %828 = vmatpush1.msra.mxu0 0.0
    %829 = vmatprep.subr.mxu0 0.0
    %830 = vmatpush1.msra.mxu0 0.0
    %831 = vmatprep.subr.mxu0 0.0
    %832 = vmatpush1.msra.mxu0 0.0
    %833 = vmatprep.mubr.f32.mxu0 0.0
    %834 = vmatmul.mubr.f32.gmra.mrb[0].mxu0 %v764
    %v835 = vpop.f32.mrb[0].mxu0
    %v836 = vadd.f32 %v756, %v835
    %v837 = vpop.f32.mrb[0].mxu0
    %838 = vmatprep.mubr.f32.mxu0 0.0
    %839 = vmatmul.mubr.f32.gmra.mrb[0].mxu0 %v767
    %v840 = vpop.f32.mrb[0].mxu0
    %v841 = vadd.f32 %v761, %v840
    %v842 = vpop.f32.mrb[0].mxu0
    %843 = vdwg.mxu0
    %v844 = vmax.f32 %v836, 0.0
    %v845 = vmax.f32 %v841, 0.0
    %v846 = vld [vmem:[%s12] sm:$0xff]
    %v847 = vld [vmem:[%s12 + $0x8] sm:$0xff]
    %849 = vset.pattern.permute.xlu0 0
    %850 = vperm.xlu0 %849, %v846
    %v851 = vpop.permute.xlu0 %850
    %854 = vset.pattern.permute.xlu0 0
    %855 = vperm.xlu0 %854, %v847
    %v856 = vpop.permute.xlu0 %855
    %v858 = vmul.f32 %v844, %v851
    %v859 = vmul.f32 %v845, %v856
    %v860 = vadd.f32 %v858, %v859
    %v861 = vrot.slane %v860, 4
    %v862 = vadd.f32 %v860, %v861
    %v863 = vrot.slane %v862, 2
    %v864 = vadd.f32 %v862, %v863
    %v865 = vrot.slane %v864, 1
    %v866 = vadd.f32 %v864, %v865
    %v867 = vld [vmem:[#allocation2] sm:$0x1]
    %869 = vset.pattern.permute.xlu0 0
    %870 = vperm.xlu0 %869, %v867
    %v871 = vpop.permute.xlu0 %870
    %v873 = vlaneseq
    %v874 = vshrl.u32 %v873, 7
    %v875 = vsub.s32 0, %v874
    %v876 = vrot.slane %v871, %v875
    %v877 = vadd.f32 %v866, %v876
    %878 = vst [vmem:[#allocation3] sm:$0x1] %v877
    // Predicated region
    $region58: #{tpu_custom_call.1} parent=1 // pred_check
      _
    $region59: #{tpu_custom_call.1} parent=1 // pred_check_branch
      %880 = sbr.rel (0) target = $region61
    $region60: #{tpu_custom_call.1} parent=1 // pred_region
      %s882 = ssub.s32 16, 16
      %883 = vsyncadd [#allocation4], %s882
      %s885 = sshll.u32 [#allocation3], 4
      %s886 = int_to_ptr.vmem [resolvable:$true] %s885
      %888 = dma.vmem_to_hbm [thread:$0]  %s886, 16, %s14, [#allocation4]
    $region61: #{tpu_custom_call.1} parent=1 // pred_fallthru
      _
    // Predicated region
    $region62: #{tpu_custom_call.1} parent=1 // pred_check
      _
    $region63: #{tpu_custom_call.1} parent=1 // pred_check_branch
      %890 = sbr.rel (0) target = $region65
    $region64: #{tpu_custom_call.1} parent=1 // pred_region
      %891 = dma.done [#allocation4], 16
    $region65: #{tpu_custom_call.1} parent=1 // pred_fallthru
      _
    %892 = vsyncpa [#allocation4], 1

</llo_original>
